<compile_context>
chip_gen: v5e
topology: v5e:2x2
jax: 0.10.0
libtpu: 0.0.40
codegen_flags: <defaults>
</compile_context>

<pallas_src>
import jax
import jax.numpy as jnp
import numpy as np
from jax.experimental import pallas as pl
from jax.experimental.pallas import tpu as pltpu


def _clip_loss_kernel(scale_ref, img_ref, txt_ref, loss_ref, acc_ref,
                      txt_n_ref, m_all_ref, l_all_ref, diag_all_ref,
                      col_max_ref, col_sum_ref,
                      lse_row_ref, lse_col_ref, diag_sum_ref, correct_ref):
    j = pl.program_id(0)           # text column block (outer axis)
    i = pl.program_id(1)           # image row block (inner axis)
    n_j = pl.num_programs(0)
    n_i = pl.num_programs(1)
    TM = img_ref.shape[0]
    TN = txt_ref.shape[0]
    B = m_all_ref.shape[0]

    eps2 = jnp.float32(1e-24)                 # (F.normalize eps = 1e-12) ** 2
    neg_inf = jnp.float32(-jnp.inf)
    scale = scale_ref[0, 0]

    @pl.when((j == 0) & (i == 0))
    def _init_scalars():
        zero = jnp.zeros((1, 1), jnp.float32)
        lse_row_ref[...] = zero
        lse_col_ref[...] = zero
        diag_sum_ref[...] = zero
        correct_ref[...] = zero

    @pl.when(i == 0)
    def _init_col_block():
        # Normalize the current text column block ONCE per outer step; keep a
        # bf16 copy resident for the MXU across all inner (image row) steps.
        t = txt_ref[...].astype(jnp.float32)
        ss_t = jnp.sum(t * t, axis=-1, keepdims=True)
        txt_n_ref[...] = (t * jax.lax.rsqrt(jnp.maximum(ss_t, eps2))
                          ).astype(jnp.bfloat16)
        col_max_ref[...] = jnp.full((1, TN), neg_inf, jnp.float32)
        col_sum_ref[...] = jnp.zeros((1, TN), jnp.float32)

    row0 = pl.multiple_of(i * TM, TM)
    rows = pl.ds(row0, TM)

    @pl.when(j == 0)
    def _init_row_block():
        m_all_ref[rows, :] = jnp.full((TM, 1), neg_inf, jnp.float32)
        l_all_ref[rows, :] = jnp.zeros((TM, 1), jnp.float32)
        diag_all_ref[rows, :] = jnp.zeros((TM, 1), jnp.float32)

    # Normalize the image row block, folding logit_scale into this operand
    # (no (TM, TN) scale multiplies); rsqrt goes to the EUP.
    im = img_ref[...].astype(jnp.float32)
    ss_i = jnp.sum(im * im, axis=-1, keepdims=True)
    im_sn = (im * (scale * jax.lax.rsqrt(jnp.maximum(ss_i, eps2)))
             ).astype(jnp.bfloat16)                                    # (TM, D)

    # (TM, TN) tile of scaled logits; bf16 MXU operands, f32 accumulation.
    logits = jax.lax.dot_general(
        im_sn, txt_n_ref[...], dimension_numbers=(((1,), (1,)), ((), ())),
        preferred_element_type=jnp.float32)

    # Diagonal (cross-entropy target) entries that fall inside this tile,
    # extracted from the MXU logits (bit-consistent with the logsumexp terms).
    col = jax.lax.broadcasted_iota(jnp.int32, (TM, TN), 1)
    lbl = (row0 - j * TN) + jax.lax.broadcasted_iota(jnp.int32, (TM, TN), 0)
    diag_blk = jnp.sum(jnp.where(col == lbl, logits, 0.0),
                       axis=-1, keepdims=True)                         # (TM, 1)

    # Streaming row-wise logsumexp (image -> text direction CE).
    m_prev = m_all_ref[rows, :]
    l_prev = l_all_ref[rows, :]
    blk_rmax = jnp.max(logits, axis=-1, keepdims=True)
    m_new = jnp.maximum(m_prev, blk_rmax)
    # NOTE: two exp passes (row- and column-shifted) are kept; merging them
    # into one rank-1 rescale only pays off if the EUP is the binding slot.
    l_new = (l_prev * jnp.exp(m_prev - m_new)
             + jnp.sum(jnp.exp(logits - m_new), axis=-1, keepdims=True))
    d_new = diag_all_ref[rows, :] + diag_blk
    m_all_ref[rows, :] = m_new
    l_all_ref[rows, :] = l_new
    diag_all_ref[rows, :] = d_new

    # Streaming column-wise logsumexp: the text-direction CE is the CE over
    # logits.T, so no second B x B matmul is needed.
    blk_cmax = jnp.max(logits, axis=0, keepdims=True)                  # (1, TN)
    c_new = jnp.maximum(col_max_ref[...], blk_cmax)
    col_sum_ref[...] = (col_sum_ref[...] * jnp.exp(col_max_ref[...] - c_new)
                        + jnp.sum(jnp.exp(logits - c_new),
                                  axis=0, keepdims=True))
    col_max_ref[...] = c_new

    @pl.when(j == n_j - 1)
    def _finalize_row_block():
        lse_row_ref[...] += jnp.sum(m_new + jnp.log(l_new),
                                    axis=0, keepdims=True)
        diag_sum_ref[...] += jnp.sum(d_new, axis=0, keepdims=True)
        # Accuracy: a row counts as correct iff its diagonal logit equals the
        # row max (first-index argmax tie-breaking differs only on exact ties).
        correct_ref[...] += jnp.sum((d_new == m_new).astype(jnp.float32),
                                    axis=0, keepdims=True)

    @pl.when(i == n_i - 1)
    def _finalize_col_block():
        lse_col_ref[...] += jnp.sum(col_max_ref[...] + jnp.log(col_sum_ref[...]),
                                    axis=-1, keepdims=True)

    @pl.when((j == n_j - 1) & (i == n_i - 1))
    def _finalize():
        b_f = jnp.float32(B)
        loss = (jnp.float32(0.5)
                * ((lse_row_ref[...] - diag_sum_ref[...])
                   + (lse_col_ref[...] - diag_sum_ref[...])) / b_f)
        loss_ref[...] = loss
        acc_ref[...] = jnp.float32(100.0) * correct_ref[...] / b_f


def _plan_tiling(B, D, itemsize, block_rows=None, block_cols=None):
    """Pick (TM, TN) tile sizes + a VMEM limit from the chip's capacity."""
    try:
        cap = int(pltpu.get_tpu_info().vmem_capacity_bytes)
    except Exception:
        cap = 64 << 20                      # assume smallest per-core VMEM (v7x)
    budget = int(cap * 0.5)

    def candidates(upper):
        c = [v for v in (2048, 1024, 512, 256, 128, 64, 32, 16, 8)
             if v <= min(upper, B) and B % v == 0]
        return c or [B]

    def footprint(tm, tn):
        live_tiles = 8                      # live (TM,TN) f32/int32 temporaries
        return (2 * tn * D * itemsize       # double-buffered raw text block
                + tn * D * 2                # resident bf16 normalized text block
                + 3 * tn * D * 4            # init-time f32 normalization temps
                + 2 * tm * D * itemsize     # double-buffered image block
                + 3 * tm * D * 4            # image normalization temporaries
                + live_tiles * tm * tn * 4  # logits / exp / mask tiles
                + 3 * B * 4 + 2 * tn * 4    # streaming softmax statistics
                + (2 << 20))                # compiler scratch headroom

    tm_cands = [block_rows] if block_rows is not None else candidates(256)
    tn_cands = [block_cols] if block_cols is not None else candidates(2048)

    tm, tn = tm_cands[-1], tn_cands[-1]     # smallest as best-effort fallback
    found = False
    for ctm in tm_cands:                    # prefer big TM (MXU M), then big TN
        for ctn in tn_cands:
            if footprint(ctm, ctn) <= budget:
                tm, tn, found = ctm, ctn, True
                break
        if found:
            break

    assert B % tm == 0 and B % tn == 0, (B, tm, tn)
    vmem_limit = int(min(max(2 * footprint(tm, tn), 32 << 20), int(cap * 0.75)))
    return tm, tn, vmem_limit


def clip_loss(outputs, block_rows=None, block_cols=None):
    image_embed = outputs['image_embed']
    text_embed = outputs['text_embed']
    logit_scale = outputs['logit_scale']

    B, D = image_embed.shape
    itemsize = jnp.dtype(image_embed.dtype).itemsize
    TM, TN, vmem_limit = _plan_tiling(B, D, itemsize, block_rows, block_cols)
    n_i, n_j = B // TM, B // TN

    scale = jnp.asarray(logit_scale, jnp.float32).reshape(1, 1)

    grid_spec = pltpu.PrefetchScalarGridSpec(
        num_scalar_prefetch=0,
        # Text-column blocks on the OUTER axis (each text block is fetched and
        # normalized exactly once); image-row blocks stream on the inner axis.
        grid=(n_j, n_i),
        in_specs=[
            pl.BlockSpec(memory_space=pltpu.MemorySpace.SMEM),      # logit_scale
            pl.BlockSpec((TM, D), lambda j, i: (i, 0)),             # image rows
            pl.BlockSpec((TN, D), lambda j, i: (j, 0)),             # text cols
        ],
        out_specs=(
            pl.BlockSpec((1, 1), lambda j, i: (0, 0)),              # loss
            pl.BlockSpec((1, 1), lambda j, i: (0, 0)),              # accuracy
        ),
        scratch_shapes=[
            pltpu.VMEM((TN, D), jnp.bfloat16),   # normalized text block (MXU RHS)
            pltpu.VMEM((B, 1), jnp.float32),     # streaming row max
            pltpu.VMEM((B, 1), jnp.float32),     # streaming row sum
            pltpu.VMEM((B, 1), jnp.float32),     # per-row diagonal logit
            pltpu.VMEM((1, TN), jnp.float32),    # streaming column max
            pltpu.VMEM((1, TN), jnp.float32),    # streaming column sum
            pltpu.VMEM((1, 1), jnp.float32),     # sum of row logsumexp
            pltpu.VMEM((1, 1), jnp.float32),     # sum of column logsumexp
            pltpu.VMEM((1, 1), jnp.float32),     # sum of diagonal targets
            pltpu.VMEM((1, 1), jnp.float32),     # correct-prediction count
        ],
    )

    loss, acc = pl.pallas_call(
        _clip_loss_kernel,
        out_shape=(
            jax.ShapeDtypeStruct((1, 1), jnp.float32),
            jax.ShapeDtypeStruct((1, 1), jnp.float32),
        ),
        grid_spec=grid_spec,
        compiler_params=pltpu.CompilerParams(
            # Both axes carry cross-block reductions (row / column logsumexp
            # and the scalar accumulators) -> "arbitrary".
            dimension_semantics=("arbitrary", "arbitrary"),
            vmem_limit_bytes=vmem_limit,
        ),
    )(scale, image_embed, text_embed)

    loss = loss[0, 0]
    acc = acc[0, 0]
    return {'loss': loss, 'clip_loss': loss, 'clip_acc': acc,
            'logit_scale': jnp.asarray(logit_scale, jnp.float32)}


def _clip_loss_ref(outputs):
    """Pure-JAX f32 reference mirroring the PyTorch module (single device)."""
    img = outputs['image_embed'].astype(jnp.float32)
    txt = outputs['text_embed'].astype(jnp.float32)
    scale = jnp.asarray(outputs['logit_scale'], jnp.float32)
    B = img.shape[0]
    labels = jnp.arange(B)
    img_n = img / jnp.maximum(jnp.linalg.norm(img, axis=-1, keepdims=True), 1e-12)
    txt_n = txt / jnp.maximum(jnp.linalg.norm(txt, axis=-1, keepdims=True), 1e-12)
    logits_i = scale * img_n @ txt_n.T
    logits_t = scale * txt_n @ img_n.T

    def ce(logits):
        lse = jax.scipy.special.logsumexp(logits, axis=-1)
        return jnp.mean(lse - logits[jnp.arange(B), labels])

    loss = 0.5 * (ce(logits_i) + ce(logits_t))
    acc = 100.0 * jnp.mean((jnp.argmax(logits_i, axis=-1) == labels)
                           .astype(jnp.float32))
    return loss, acc


if __name__ == "__main__":
    key = jax.random.PRNGKey(0)

    def make_case(k, B, D, scale, noise):
        k1, k2 = jax.random.split(k)
        img = jax.random.normal(k1, (B, D), dtype=jnp.float32)
        txt = img + noise * jax.random.normal(k2, (B, D), dtype=jnp.float32)
        return {'image_embed': img, 'text_embed': txt,
                'logit_scale': jnp.float32(scale)}

    keys = jax.random.split(key, 3)
    cases = [
        (make_case(keys[0], 8, 32, 1.0 / 0.07, 0.3), None, None),  # single tile, CLIP temp
        (make_case(keys[1], 8, 32, 4.0, 0.3), None, None),         # moderate logits
        (make_case(keys[2], 16, 64, 4.0, 0.3), 8, 8),              # 2x2 block grid path
    ]

    for outputs, br, bc in cases:
        result = clip_loss(outputs, block_rows=br, block_cols=bc)
        jax.block_until_ready(result)
        ref_loss, ref_acc = _clip_loss_ref(outputs)
        # bf16 MXU operands => ~1e-3-level relative error in the logits.
        np.testing.assert_allclose(np.asarray(result['loss']),
                                   np.asarray(ref_loss), rtol=2e-2, atol=2e-2)
        np.testing.assert_allclose(np.asarray(result['clip_acc']),
                                   np.asarray(ref_acc), rtol=1e-6, atol=1e-6)

    print("KERNEL_OK")
</pallas_src>

<mosaic_0001>
module attributes {stable_mosaic.version = 11 : i64} {
  func.func @_clip_loss_kernel(%arg0: i32, %arg1: i32, %arg2: memref<1x1xf32, #tpu.memory_space<smem>>, %arg3: memref<8x32xf32, #tpu.memory_space<vmem>>, %arg4: memref<8x32xf32, #tpu.memory_space<vmem>>, %arg5: memref<1x1xf32, #tpu.memory_space<vmem>>, %arg6: memref<1x1xf32, #tpu.memory_space<vmem>>, %arg7: memref<8x32xbf16, #tpu.memory_space<vmem>>, %arg8: memref<8x1xf32, #tpu.memory_space<vmem>>, %arg9: memref<8x1xf32, #tpu.memory_space<vmem>>, %arg10: memref<8x1xf32, #tpu.memory_space<vmem>>, %arg11: memref<1x8xf32, #tpu.memory_space<vmem>>, %arg12: memref<1x8xf32, #tpu.memory_space<vmem>>, %arg13: memref<1x1xf32, #tpu.memory_space<vmem>>, %arg14: memref<1x1xf32, #tpu.memory_space<vmem>>, %arg15: memref<1x1xf32, #tpu.memory_space<vmem>>, %arg16: memref<1x1xf32, #tpu.memory_space<vmem>>) attributes {dimension_semantics = [#tpu.dimension_semantics<arbitrary>, #tpu.dimension_semantics<arbitrary>], iteration_bounds = array<i64: 1, 1>, scalar_prefetch = 0 : i64, scratch_operands = 10 : i64, tpu.core_type = #tpu.core_type<tc>, window_params = [{transform_indices = @transform_0, window_bounds = array<i64: 1, 1>}, {transform_indices = @transform_1, window_bounds = array<i64: 8, 32>}, {transform_indices = @transform_2, window_bounds = array<i64: 8, 32>}, {pipeline_mode = #tpu.pipeline_mode<synchronous>, transform_indices = @transform_3, window_bounds = array<i64: 1, 1>}, {pipeline_mode = #tpu.pipeline_mode<synchronous>, transform_indices = @transform_4, window_bounds = array<i64: 1, 1>}]} {
    %c0 = arith.constant 0 : index
    %c0_0 = arith.constant 0 : index
    %0 = memref.load %arg2[%c0, %c0_0] : memref<1x1xf32, #tpu.memory_space<smem>>
    %c0_i32 = arith.constant 0 : i32
    %1 = arith.cmpi eq, %arg0, %c0_i32 : i32
    %c0_i32_1 = arith.constant 0 : i32
    %2 = arith.cmpi eq, %arg1, %c0_i32_1 : i32
    %3 = arith.andi %1, %2 : i1
    %4 = arith.extui %3 : i1 to i32
    %c0_i32_2 = arith.constant 0 : i32
    %5 = arith.cmpi ne, %4, %c0_i32_2 : i32
    scf.if %5 {
      %cst_46 = arith.constant 0.000000e+00 : f32
      %92 = vector.broadcast %cst_46 : f32 to vector<1x1xf32>
      %c0_47 = arith.constant 0 : index
      %c0_48 = arith.constant 0 : index
      %93 = vector.load %arg13[%c0_47, %c0_48] : memref<1x1xf32, #tpu.memory_space<vmem>>, vector<1x1xf32>
      tpu.vector_store %arg13[%c0_47, %c0_48], %92 {strides = array<i32>} : memref<1x1xf32, #tpu.memory_space<vmem>>, vector<1x1xf32>,
      %c0_49 = arith.constant 0 : index
      %c0_50 = arith.constant 0 : index
      %94 = vector.load %arg14[%c0_49, %c0_50] : memref<1x1xf32, #tpu.memory_space<vmem>>, vector<1x1xf32>
      tpu.vector_store %arg14[%c0_49, %c0_50], %92 {strides = array<i32>} : memref<1x1xf32, #tpu.memory_space<vmem>>, vector<1x1xf32>,
      %c0_51 = arith.constant 0 : index
      %c0_52 = arith.constant 0 : index
      %95 = vector.load %arg15[%c0_51, %c0_52] : memref<1x1xf32, #tpu.memory_space<vmem>>, vector<1x1xf32>
      tpu.vector_store %arg15[%c0_51, %c0_52], %92 {strides = array<i32>} : memref<1x1xf32, #tpu.memory_space<vmem>>, vector<1x1xf32>,
      %c0_53 = arith.constant 0 : index
      %c0_54 = arith.constant 0 : index
      %96 = vector.load %arg16[%c0_53, %c0_54] : memref<1x1xf32, #tpu.memory_space<vmem>>, vector<1x1xf32>
      tpu.vector_store %arg16[%c0_53, %c0_54], %92 {strides = array<i32>} : memref<1x1xf32, #tpu.memory_space<vmem>>, vector<1x1xf32>,
    } else {
    }
    %c0_i32_3 = arith.constant 0 : i32
    %6 = arith.cmpi eq, %arg1, %c0_i32_3 : i32
    %7 = arith.extui %6 : i1 to i32
    %cst = arith.constant 1.000000e-24 : f32
    %cst_4 = arith.constant 0xFF800000 : f32
    %c0_i32_5 = arith.constant 0 : i32
    %8 = arith.cmpi ne, %7, %c0_i32_5 : i32
    scf.if %8 {
      %c0_46 = arith.constant 0 : index
      %c0_47 = arith.constant 0 : index
      %92 = vector.load %arg4[%c0_46, %c0_47] : memref<8x32xf32, #tpu.memory_space<vmem>>, vector<8x32xf32>
      %93 = arith.mulf %92, %92 : vector<8x32xf32>
      %cst_48 = arith.constant dense<0.000000e+00> : vector<8xf32>
      %94 = vector.multi_reduction <add>, %93, %cst_48 [1] : vector<8x32xf32> to vector<8xf32>
      %95 = vector.shape_cast %94 : vector<8xf32> to vector<8x1xf32>
      %96 = vector.broadcast %cst : f32 to vector<8x1xf32>
      %97 = arith.maximumf %95, %96 : vector<8x1xf32>
      %98 = math.rsqrt %97 : vector<8x1xf32>
      %99 = vector.broadcast %98 : vector<8x1xf32> to vector<8x32xf32>
      %100 = arith.mulf %92, %99 : vector<8x32xf32>
      %101 = arith.truncf %100 : vector<8x32xf32> to vector<8x32xbf16>
      %c0_49 = arith.constant 0 : index
      %c0_50 = arith.constant 0 : index
      %102 = vector.load %arg7[%c0_49, %c0_50] : memref<8x32xbf16, #tpu.memory_space<vmem>>, vector<8x32xbf16>
      tpu.vector_store %arg7[%c0_49, %c0_50], %101 {strides = array<i32>} : memref<8x32xbf16, #tpu.memory_space<vmem>>, vector<8x32xbf16>,
      %103 = vector.broadcast %cst_4 : f32 to vector<1x8xf32>
      %c0_51 = arith.constant 0 : index
      %c0_52 = arith.constant 0 : index
      %104 = vector.load %arg11[%c0_51, %c0_52] : memref<1x8xf32, #tpu.memory_space<vmem>>, vector<1x8xf32>
      tpu.vector_store %arg11[%c0_51, %c0_52], %103 {strides = array<i32>} : memref<1x8xf32, #tpu.memory_space<vmem>>, vector<1x8xf32>,
      %cst_53 = arith.constant 0.000000e+00 : f32
      %105 = vector.broadcast %cst_53 : f32 to vector<1x8xf32>
      %c0_54 = arith.constant 0 : index
      %c0_55 = arith.constant 0 : index
      %106 = vector.load %arg12[%c0_54, %c0_55] : memref<1x8xf32, #tpu.memory_space<vmem>>, vector<1x8xf32>
      tpu.vector_store %arg12[%c0_54, %c0_55], %105 {strides = array<i32>} : memref<1x8xf32, #tpu.memory_space<vmem>>, vector<1x8xf32>,
    } else {
    }
    %c8_i32 = arith.constant 8 : i32
    %9 = arith.muli %arg1, %c8_i32 : i32
    %10 = tpu.assume_multiple %9, 8 : i32
    %c0_i32_6 = arith.constant 0 : i32
    %11 = arith.cmpi eq, %arg0, %c0_i32_6 : i32
    %12 = arith.extui %11 : i1 to i32
    %cst_7 = arith.constant 0xFF800000 : f32
    %c0_i32_8 = arith.constant 0 : i32
    %13 = arith.cmpi ne, %12, %c0_i32_8 : i32
    scf.if %13 {
      %92 = vector.broadcast %cst_7 : f32 to vector<8x1xf32>
      %93 = arith.index_cast %10 : i32 to index
      %c0_46 = arith.constant 0 : index
      %94 = vector.load %arg8[%93, %c0_46] : memref<8x1xf32, #tpu.memory_space<vmem>>, vector<8x1xf32>
      tpu.vector_store %arg8[%93, %c0_46], %92 {strides = array<i32>} : memref<8x1xf32, #tpu.memory_space<vmem>>, vector<8x1xf32>,
      %cst_47 = arith.constant 0.000000e+00 : f32
      %95 = vector.broadcast %cst_47 : f32 to vector<8x1xf32>
      %96 = arith.index_cast %10 : i32 to index
      %c0_48 = arith.constant 0 : index
      %97 = vector.load %arg9[%96, %c0_48] : memref<8x1xf32, #tpu.memory_space<vmem>>, vector<8x1xf32>
      tpu.vector_store %arg9[%96, %c0_48], %95 {strides = array<i32>} : memref<8x1xf32, #tpu.memory_space<vmem>>, vector<8x1xf32>,
      %cst_49 = arith.constant 0.000000e+00 : f32
      %98 = vector.broadcast %cst_49 : f32 to vector<8x1xf32>
      %99 = arith.index_cast %10 : i32 to index
      %c0_50 = arith.constant 0 : index
      %100 = vector.load %arg10[%99, %c0_50] : memref<8x1xf32, #tpu.memory_space<vmem>>, vector<8x1xf32>
      tpu.vector_store %arg10[%99, %c0_50], %98 {strides = array<i32>} : memref<8x1xf32, #tpu.memory_space<vmem>>, vector<8x1xf32>,
    } else {
    }
    %c0_9 = arith.constant 0 : index
    %c0_10 = arith.constant 0 : index
    %14 = vector.load %arg3[%c0_9, %c0_10] : memref<8x32xf32, #tpu.memory_space<vmem>>, vector<8x32xf32>
    %15 = arith.mulf %14, %14 : vector<8x32xf32>
    %cst_11 = arith.constant dense<0.000000e+00> : vector<8xf32>
    %16 = vector.multi_reduction <add>, %15, %cst_11 [1] : vector<8x32xf32> to vector<8xf32>
    %17 = vector.shape_cast %16 : vector<8xf32> to vector<8x1xf32>
    %cst_12 = arith.constant 1.000000e-24 : f32
    %18 = vector.broadcast %cst_12 : f32 to vector<8x1xf32>
    %19 = arith.maximumf %17, %18 : vector<8x1xf32>
    %20 = math.rsqrt %19 : vector<8x1xf32>
    %21 = vector.broadcast %0 : f32 to vector<8x1xf32>
    %22 = arith.mulf %21, %20 : vector<8x1xf32>
    %23 = vector.broadcast %22 : vector<8x1xf32> to vector<8x32xf32>
    %24 = arith.mulf %14, %23 : vector<8x32xf32>
    %25 = arith.truncf %24 : vector<8x32xf32> to vector<8x32xbf16>
    %c0_13 = arith.constant 0 : index
    %c0_14 = arith.constant 0 : index
    %26 = vector.load %arg7[%c0_13, %c0_14] : memref<8x32xbf16, #tpu.memory_space<vmem>>, vector<8x32xbf16>
    %cst_15 = arith.constant dense<0.000000e+00> : vector<8x8xf32>
    %27 = tpu.matmul %25, %26, %cst_15 {dimension_numbers = #tpu.dot_dimension_numbers<[1], [1], [0], [0], [0, 0, 1, 0], [], []>} : vector<8x32xbf16>, vector<8x32xbf16>, vector<8x8xf32> -> vector<8x8xf32>
    %28 = tpu.iota {dimensions = array<i32: 1>} : vector<8x8xi32>
    %c8_i32_16 = arith.constant 8 : i32
    %29 = arith.muli %arg0, %c8_i32_16 : i32
    %30 = arith.subi %10, %29 : i32
    %31 = tpu.iota {dimensions = array<i32: 0>} : vector<8x8xi32>
    %32 = vector.broadcast %30 : i32 to vector<8x8xi32>
    %33 = arith.addi %32, %31 : vector<8x8xi32>
    %34 = arith.cmpi eq, %28, %33 : vector<8x8xi32>
    %cst_17 = arith.constant 0.000000e+00 : f32
    %35 = vector.broadcast %cst_17 : f32 to vector<8x8xf32>
    %36 = arith.select %34, %27, %35 : vector<8x8xi1>, vector<8x8xf32>
    %cst_18 = arith.constant dense<0.000000e+00> : vector<8xf32>
    %37 = vector.multi_reduction <add>, %36, %cst_18 [1] : vector<8x8xf32> to vector<8xf32>
    %38 = vector.shape_cast %37 : vector<8xf32> to vector<8x1xf32>
    %39 = arith.index_cast %10 : i32 to index
    %c0_19 = arith.constant 0 : index
    %40 = vector.load %arg8[%39, %c0_19] : memref<8x1xf32, #tpu.memory_space<vmem>>, vector<8x1xf32>
    %41 = arith.index_cast %10 : i32 to index
    %c0_20 = arith.constant 0 : index
    %42 = vector.load %arg9[%41, %c0_20] : memref<8x1xf32, #tpu.memory_space<vmem>>, vector<8x1xf32>
    %cst_21 = arith.constant dense<0xFF800000> : vector<8xf32>
    %43 = vector.multi_reduction <maximumf>, %27, %cst_21 [1] : vector<8x8xf32> to vector<8xf32>
    %44 = vector.shape_cast %43 : vector<8xf32> to vector<8x1xf32>
    %45 = arith.maximumf %40, %44 : vector<8x1xf32>
    %46 = arith.subf %40, %45 : vector<8x1xf32>
    %47 = math.exp %46 : vector<8x1xf32>
    %48 = arith.mulf %42, %47 : vector<8x1xf32>
    %49 = vector.broadcast %45 : vector<8x1xf32> to vector<8x8xf32>
    %50 = arith.subf %27, %49 : vector<8x8xf32>
    %51 = math.exp %50 : vector<8x8xf32>
    %cst_22 = arith.constant dense<0.000000e+00> : vector<8xf32>
    %52 = vector.multi_reduction <add>, %51, %cst_22 [1] : vector<8x8xf32> to vector<8xf32>
    %53 = vector.shape_cast %52 : vector<8xf32> to vector<8x1xf32>
    %54 = arith.addf %48, %53 : vector<8x1xf32>
    %55 = arith.index_cast %10 : i32 to index
    %c0_23 = arith.constant 0 : index
    %56 = vector.load %arg10[%55, %c0_23] : memref<8x1xf32, #tpu.memory_space<vmem>>, vector<8x1xf32>
    %57 = arith.addf %56, %38 : vector<8x1xf32>
    %58 = arith.index_cast %10 : i32 to index
    %c0_24 = arith.constant 0 : index
    %59 = vector.load %arg8[%58, %c0_24] : memref<8x1xf32, #tpu.memory_space<vmem>>, vector<8x1xf32>
    tpu.vector_store %arg8[%58, %c0_24], %45 {strides = array<i32>} : memref<8x1xf32, #tpu.memory_space<vmem>>, vector<8x1xf32>,
    %60 = arith.index_cast %10 : i32 to index
    %c0_25 = arith.constant 0 : index
    %61 = vector.load %arg9[%60, %c0_25] : memref<8x1xf32, #tpu.memory_space<vmem>>, vector<8x1xf32>
    tpu.vector_store %arg9[%60, %c0_25], %54 {strides = array<i32>} : memref<8x1xf32, #tpu.memory_space<vmem>>, vector<8x1xf32>,
    %62 = arith.index_cast %10 : i32 to index
    %c0_26 = arith.constant 0 : index
    %63 = vector.load %arg10[%62, %c0_26] : memref<8x1xf32, #tpu.memory_space<vmem>>, vector<8x1xf32>
    tpu.vector_store %arg10[%62, %c0_26], %57 {strides = array<i32>} : memref<8x1xf32, #tpu.memory_space<vmem>>, vector<8x1xf32>,
    %cst_27 = arith.constant dense<0xFF800000> : vector<8xf32>
    %64 = vector.multi_reduction <maximumf>, %27, %cst_27 [0] : vector<8x8xf32> to vector<8xf32>
    %65 = vector.shape_cast %64 : vector<8xf32> to vector<1x8xf32>
    %c0_28 = arith.constant 0 : index
    %c0_29 = arith.constant 0 : index
    %66 = vector.load %arg11[%c0_28, %c0_29] : memref<1x8xf32, #tpu.memory_space<vmem>>, vector<1x8xf32>
    %67 = arith.maximumf %66, %65 : vector<1x8xf32>
    %c0_30 = arith.constant 0 : index
    %c0_31 = arith.constant 0 : index
    %68 = vector.load %arg12[%c0_30, %c0_31] : memref<1x8xf32, #tpu.memory_space<vmem>>, vector<1x8xf32>
    %c0_32 = arith.constant 0 : index
    %c0_33 = arith.constant 0 : index
    %69 = vector.load %arg11[%c0_32, %c0_33] : memref<1x8xf32, #tpu.memory_space<vmem>>, vector<1x8xf32>
    %70 = arith.subf %69, %67 : vector<1x8xf32>
    %71 = math.exp %70 : vector<1x8xf32>
    %72 = arith.mulf %68, %71 : vector<1x8xf32>
    %73 = vector.broadcast %67 : vector<1x8xf32> to vector<8x8xf32>
    %74 = arith.subf %27, %73 : vector<8x8xf32>
    %75 = math.exp %74 : vector<8x8xf32>
    %cst_34 = arith.constant dense<0.000000e+00> : vector<8xf32>
    %76 = vector.multi_reduction <add>, %75, %cst_34 [0] : vector<8x8xf32> to vector<8xf32>
    %77 = vector.shape_cast %76 : vector<8xf32> to vector<1x8xf32>
    %78 = arith.addf %72, %77 : vector<1x8xf32>
    %c0_35 = arith.constant 0 : index
    %c0_36 = arith.constant 0 : index
    %79 = vector.load %arg12[%c0_35, %c0_36] : memref<1x8xf32, #tpu.memory_space<vmem>>, vector<1x8xf32>
    tpu.vector_store %arg12[%c0_35, %c0_36], %78 {strides = array<i32>} : memref<1x8xf32, #tpu.memory_space<vmem>>, vector<1x8xf32>,
    %c0_37 = arith.constant 0 : index
    %c0_38 = arith.constant 0 : index
    %80 = vector.load %arg11[%c0_37, %c0_38] : memref<1x8xf32, #tpu.memory_space<vmem>>, vector<1x8xf32>
    tpu.vector_store %arg11[%c0_37, %c0_38], %67 {strides = array<i32>} : memref<1x8xf32, #tpu.memory_space<vmem>>, vector<1x8xf32>,
    %c0_i32_39 = arith.constant 0 : i32
    %81 = arith.cmpi eq, %arg0, %c0_i32_39 : i32
    %82 = arith.extui %81 : i1 to i32
    %c0_i32_40 = arith.constant 0 : i32
    %83 = arith.cmpi ne, %82, %c0_i32_40 : i32
    scf.if %83 {
      %c0_46 = arith.constant 0 : index
      %c0_47 = arith.constant 0 : index
      %92 = vector.load %arg13[%c0_46, %c0_47] : memref<1x1xf32, #tpu.memory_space<vmem>>, vector<1x1xf32>
      %93 = math.log %54 : vector<8x1xf32>
      %94 = arith.addf %45, %93 : vector<8x1xf32>
      %cst_48 = arith.constant dense<0.000000e+00> : vector<1xf32>
      %95 = vector.multi_reduction <add>, %94, %cst_48 [0] : vector<8x1xf32> to vector<1xf32>
      %96 = vector.shape_cast %95 : vector<1xf32> to vector<1x1xf32>
      %97 = arith.addf %92, %96 : vector<1x1xf32>
      %c0_49 = arith.constant 0 : index
      %c0_50 = arith.constant 0 : index
      %98 = vector.load %arg13[%c0_49, %c0_50] : memref<1x1xf32, #tpu.memory_space<vmem>>, vector<1x1xf32>
      tpu.vector_store %arg13[%c0_49, %c0_50], %97 {strides = array<i32>} : memref<1x1xf32, #tpu.memory_space<vmem>>, vector<1x1xf32>,
      %c0_51 = arith.constant 0 : index
      %c0_52 = arith.constant 0 : index
      %99 = vector.load %arg15[%c0_51, %c0_52] : memref<1x1xf32, #tpu.memory_space<vmem>>, vector<1x1xf32>
      %cst_53 = arith.constant dense<0.000000e+00> : vector<1xf32>
      %100 = vector.multi_reduction <add>, %57, %cst_53 [0] : vector<8x1xf32> to vector<1xf32>
      %101 = vector.shape_cast %100 : vector<1xf32> to vector<1x1xf32>
      %102 = arith.addf %99, %101 : vector<1x1xf32>
      %c0_54 = arith.constant 0 : index
      %c0_55 = arith.constant 0 : index
      %103 = vector.load %arg15[%c0_54, %c0_55] : memref<1x1xf32, #tpu.memory_space<vmem>>, vector<1x1xf32>
      tpu.vector_store %arg15[%c0_54, %c0_55], %102 {strides = array<i32>} : memref<1x1xf32, #tpu.memory_space<vmem>>, vector<1x1xf32>,
      %c0_56 = arith.constant 0 : index
      %c0_57 = arith.constant 0 : index
      %104 = vector.load %arg16[%c0_56, %c0_57] : memref<1x1xf32, #tpu.memory_space<vmem>>, vector<1x1xf32>
      %105 = arith.cmpf oeq, %57, %45 : vector<8x1xf32>
      %106 = arith.extui %105 : vector<8x1xi1> to vector<8x1xi32>
      %107 = arith.sitofp %106 : vector<8x1xi32> to vector<8x1xf32>
      %cst_58 = arith.constant dense<0.000000e+00> : vector<1xf32>
      %108 = vector.multi_reduction <add>, %107, %cst_58 [0] : vector<8x1xf32> to vector<1xf32>
      %109 = vector.shape_cast %108 : vector<1xf32> to vector<1x1xf32>
      %110 = arith.addf %104, %109 : vector<1x1xf32>
      %c0_59 = arith.constant 0 : index
      %c0_60 = arith.constant 0 : index
      %111 = vector.load %arg16[%c0_59, %c0_60] : memref<1x1xf32, #tpu.memory_space<vmem>>, vector<1x1xf32>
      tpu.vector_store %arg16[%c0_59, %c0_60], %110 {strides = array<i32>} : memref<1x1xf32, #tpu.memory_space<vmem>>, vector<1x1xf32>,
    } else {
    }
    %c0_i32_41 = arith.constant 0 : i32
    %84 = arith.cmpi eq, %arg1, %c0_i32_41 : i32
    %85 = arith.extui %84 : i1 to i32
    %c0_i32_42 = arith.constant 0 : i32
    %86 = arith.cmpi ne, %85, %c0_i32_42 : i32
    scf.if %86 {
      %c0_46 = arith.constant 0 : index
      %c0_47 = arith.constant 0 : index
      %92 = vector.load %arg14[%c0_46, %c0_47] : memref<1x1xf32, #tpu.memory_space<vmem>>, vector<1x1xf32>
      %c0_48 = arith.constant 0 : index
      %c0_49 = arith.constant 0 : index
      %93 = vector.load %arg11[%c0_48, %c0_49] : memref<1x8xf32, #tpu.memory_space<vmem>>, vector<1x8xf32>
      %c0_50 = arith.constant 0 : index
      %c0_51 = arith.constant 0 : index
      %94 = vector.load %arg12[%c0_50, %c0_51] : memref<1x8xf32, #tpu.memory_space<vmem>>, vector<1x8xf32>
      %95 = math.log %94 : vector<1x8xf32>
      %96 = arith.addf %93, %95 : vector<1x8xf32>
      %cst_52 = arith.constant dense<0.000000e+00> : vector<1xf32>
      %97 = vector.multi_reduction <add>, %96, %cst_52 [1] : vector<1x8xf32> to vector<1xf32>
      %98 = vector.shape_cast %97 : vector<1xf32> to vector<1x1xf32>
      %99 = arith.addf %92, %98 : vector<1x1xf32>
      %c0_53 = arith.constant 0 : index
      %c0_54 = arith.constant 0 : index
      %100 = vector.load %arg14[%c0_53, %c0_54] : memref<1x1xf32, #tpu.memory_space<vmem>>, vector<1x1xf32>
      tpu.vector_store %arg14[%c0_53, %c0_54], %99 {strides = array<i32>} : memref<1x1xf32, #tpu.memory_space<vmem>>, vector<1x1xf32>,
    } else {
    }
    %c0_i32_43 = arith.constant 0 : i32
    %87 = arith.cmpi eq, %arg0, %c0_i32_43 : i32
    %c0_i32_44 = arith.constant 0 : i32
    %88 = arith.cmpi eq, %arg1, %c0_i32_44 : i32
    %89 = arith.andi %87, %88 : i1
    %90 = arith.extui %89 : i1 to i32
    %c0_i32_45 = arith.constant 0 : i32
    %91 = arith.cmpi ne, %90, %c0_i32_45 : i32
    scf.if %91 {
      %c0_46 = arith.constant 0 : index
      %c0_47 = arith.constant 0 : index
      %92 = vector.load %arg13[%c0_46, %c0_47] : memref<1x1xf32, #tpu.memory_space<vmem>>, vector<1x1xf32>
      %c0_48 = arith.constant 0 : index
      %c0_49 = arith.constant 0 : index
      %93 = vector.load %arg15[%c0_48, %c0_49] : memref<1x1xf32, #tpu.memory_space<vmem>>, vector<1x1xf32>
      %94 = arith.subf %92, %93 : vector<1x1xf32>
      %c0_50 = arith.constant 0 : index
      %c0_51 = arith.constant 0 : index
      %95 = vector.load %arg14[%c0_50, %c0_51] : memref<1x1xf32, #tpu.memory_space<vmem>>, vector<1x1xf32>
      %c0_52 = arith.constant 0 : index
      %c0_53 = arith.constant 0 : index
      %96 = vector.load %arg15[%c0_52, %c0_53] : memref<1x1xf32, #tpu.memory_space<vmem>>, vector<1x1xf32>
      %97 = arith.subf %95, %96 : vector<1x1xf32>
      %98 = arith.addf %94, %97 : vector<1x1xf32>
      %cst_54 = arith.constant 5.000000e-01 : f32
      %99 = vector.broadcast %cst_54 : f32 to vector<1x1xf32>
      %100 = arith.mulf %99, %98 : vector<1x1xf32>
      %cst_55 = arith.constant 8.000000e+00 : f32
      %101 = vector.broadcast %cst_55 : f32 to vector<1x1xf32>
      %102 = arith.divf %100, %101 : vector<1x1xf32>
      %c0_56 = arith.constant 0 : index
      %c0_57 = arith.constant 0 : index
      %103 = vector.load %arg5[%c0_56, %c0_57] : memref<1x1xf32, #tpu.memory_space<vmem>>, vector<1x1xf32>
      tpu.vector_store %arg5[%c0_56, %c0_57], %102 {strides = array<i32>} : memref<1x1xf32, #tpu.memory_space<vmem>>, vector<1x1xf32>,
      %c0_58 = arith.constant 0 : index
      %c0_59 = arith.constant 0 : index
      %104 = vector.load %arg16[%c0_58, %c0_59] : memref<1x1xf32, #tpu.memory_space<vmem>>, vector<1x1xf32>
      %cst_60 = arith.constant 1.000000e+02 : f32
      %105 = vector.broadcast %cst_60 : f32 to vector<1x1xf32>
      %106 = arith.mulf %105, %104 : vector<1x1xf32>
      %cst_61 = arith.constant 8.000000e+00 : f32
      %107 = vector.broadcast %cst_61 : f32 to vector<1x1xf32>
      %108 = arith.divf %106, %107 : vector<1x1xf32>
      %c0_62 = arith.constant 0 : index
      %c0_63 = arith.constant 0 : index
      %109 = vector.load %arg6[%c0_62, %c0_63] : memref<1x1xf32, #tpu.memory_space<vmem>>, vector<1x1xf32>
      tpu.vector_store %arg6[%c0_62, %c0_63], %108 {strides = array<i32>} : memref<1x1xf32, #tpu.memory_space<vmem>>, vector<1x1xf32>,
    } else {
    }
    return
  }
  func.func @transform_0(%arg0: i32, %arg1: i32) -> (i32, i32) {
    %c0_i32 = arith.constant 0 : i32
    %c0_i32_0 = arith.constant 0 : i32
    %c0_i32_1 = arith.constant 0 : i32
    return %c0_i32, %c0_i32_0 : i32, i32
  }
  func.func @transform_1(%arg0: i32, %arg1: i32) -> (i32, i32) {
    %c0_i32 = arith.constant 0 : i32
    %c0_i32_0 = arith.constant 0 : i32
    return %arg1, %c0_i32 : i32, i32
  }
  func.func @transform_2(%arg0: i32, %arg1: i32) -> (i32, i32) {
    %c0_i32 = arith.constant 0 : i32
    %c0_i32_0 = arith.constant 0 : i32
    return %arg0, %c0_i32 : i32, i32
  }
  func.func @transform_3(%arg0: i32, %arg1: i32) -> (i32, i32) {
    %c0_i32 = arith.constant 0 : i32
    %c0_i32_0 = arith.constant 0 : i32
    %c0_i32_1 = arith.constant 0 : i32
    return %c0_i32, %c0_i32_0 : i32, i32
  }
  func.func @transform_4(%arg0: i32, %arg1: i32) -> (i32, i32) {
    %c0_i32 = arith.constant 0 : i32
    %c0_i32_0 = arith.constant 0 : i32
    %c0_i32_1 = arith.constant 0 : i32
    return %c0_i32, %c0_i32_0 : i32, i32
  }
}

</mosaic_0001>

<llo_original>
// kernel: tpu_custom_call.1
$region0: #{tpu_custom_call.1}
  #allocation0 [shape = 'u32[]', space=smem, size = 0x4, offset = 0x4, fixed_abs, tag = 'smem constant byte address 0x4 - core index']
  #allocation1 [shape = 'u32[72,128]{1,0:T(1,128)}', space=vmem, size = 0x9000, scoped, tag = 'internal scratch']
  #allocation2 [shape = 'bf16[8,32]{1,0:T(8,128)(2,1)}', space=vmem, size = 0x800, scoped, tag = 'scratch operand']
  #allocation3 [shape = 'f32[8,1]{1,0:T(8,128)}', space=vmem, size = 0x1000, scoped, tag = 'scratch operand']
  #allocation4 [shape = 'f32[8,1]{1,0:T(8,128)}', space=vmem, size = 0x1000, scoped, tag = 'scratch operand']
  #allocation5 [shape = 'f32[8,1]{1,0:T(8,128)}', space=vmem, size = 0x1000, scoped, tag = 'scratch operand']
  #allocation6 [shape = 'f32[1,8]{1,0:T(1,128)}', space=vmem, size = 0x200, scoped, tag = 'scratch operand']
  #allocation7 [shape = 'f32[1,8]{1,0:T(1,128)}', space=vmem, size = 0x200, scoped, tag = 'scratch operand']
  #allocation8 [shape = 'f32[1,1]{1,0:T(1,128)}', space=vmem, size = 0x200, scoped, tag = 'scratch operand']
  #allocation9 [shape = 'f32[1,1]{1,0:T(1,128)}', space=vmem, size = 0x200, scoped, tag = 'scratch operand']
  #allocation10 [shape = 'f32[1,1]{1,0:T(1,128)}', space=vmem, size = 0x200, scoped, tag = 'scratch operand']
  #allocation11 [shape = 'f32[1,1]{1,0:T(1,128)}', space=vmem, size = 0x200, scoped, tag = 'scratch operand']
  #allocation12 [shape = 'f32[1,1]{1,0:T(1,128)S(6)}', space=smem, size = 0x200, scoped, tag = 'scoped memory for tpu_custom_call.1']
  %s0 = inlined_call_operand.<no memory space> [shape: f32[1,1], index: 0, kind: input, shape index: {}]
  %s1 = inlined_call_operand.hbm [shape: f32[8,32], index: 1, kind: input, shape index: {}]
  %s2 = inlined_call_operand.hbm [shape: f32[8,32], index: 2, kind: input, shape index: {}]
  %s3 = inlined_call_operand.hbm [shape: f32[1,1], index: 3, kind: output, shape index: {0}]
  %s4 = inlined_call_operand.hbm [shape: f32[1,1], index: 4, kind: output, shape index: {1}]
  %5 = xla_tuple %s3, %s4
  %s6 = sld [smem:[#allocation0]]
  $region62: #{tpu_custom_call.1} parent=0
    _
  %s8 = ssub.s32 1, %s6
  %s9 = scalar_select 0, %s8, %s6
  %10 = sst [smem:[#allocation12]] %s0
  $region1: #{tpu_custom_call.1} parent=0
    #allocation13 [shape = 'u8[4096]{0}', space=vmem, size = 0x1000, scoped, tag = 'input window, operand 1, single buffered']
    #allocation14 [shape = 's32[1]{0}', space=sflag, size = 0x4, scoped, tag = 'scoped memory for tpu_custom_call.1']
    #allocation15 [shape = 's32[1]{0}', space=sflag, size = 0x4, scoped, tag = 'scoped memory for tpu_custom_call.1']
    #allocation16 [shape = 'u8[4096]{0}', space=vmem, size = 0x1000, scoped, tag = 'input window, operand 2, single buffered']
    #allocation17 [shape = 's32[1]{0}', space=sflag, size = 0x4, scoped, tag = 'scoped memory for tpu_custom_call.1']
    #allocation18 [shape = 'u8[512]{0}', space=vmem, size = 0x400, scoped, tag = 'output window, operand 0, single buffered']
    #allocation19 [shape = 'u8[512]{0}', space=vmem, size = 0x400, scoped, tag = 'output window, operand 1, single buffered']
    #allocation20 [shape = 's32[1]{0}', space=sflag, size = 0x4, scoped, tag = 'scoped memory for tpu_custom_call.1']
    %11 = vsyncpa [#allocation14], 0
    %12 = vsyncpa [#allocation17], 0
    %13 = vsyncpa [#allocation15], 0
    %14 = vsyncpa [#allocation20], 0
    // Predicated region
    $region2: #{tpu_custom_call.1} parent=1 // pred_check
      _
    $region3: #{tpu_custom_call.1} parent=1 // pred_check_branch
      %16 = sbr.rel (0) target = $region5
    $region4: #{tpu_custom_call.1} parent=1 // pred_region
      _
    $region5: #{tpu_custom_call.1} parent=1 // pred_fallthru
      _
    // Predicated region
    $region6: #{tpu_custom_call.1} parent=1 // pred_check
      _
    $region7: #{tpu_custom_call.1} parent=1 // pred_check_branch
      %18 = sbr.rel (0) target = $region9
    $region8: #{tpu_custom_call.1} parent=1 // pred_region
      %20 = vsyncadd [#allocation14], 0
      %s22 = sshll.u32 %s1, 4
      %s23 = int_to_ptr.hbm [resolvable:$true] %s22
      %s24 = sshll.u32 [#allocation13], 4
      %s25 = int_to_ptr.vmem [resolvable:$true] %s24
      %27 = dma.hbm_to_vmem [thread:$0]  %s23, 128, %s25, [#allocation14]
    $region9: #{tpu_custom_call.1} parent=1 // pred_fallthru
      _
    // Predicated region
    $region10: #{tpu_custom_call.1} parent=1 // pred_check
      _
    $region11: #{tpu_custom_call.1} parent=1 // pred_check_branch
      %29 = sbr.rel (0) target = $region13
    $region12: #{tpu_custom_call.1} parent=1 // pred_region
      %31 = vsyncadd [#allocation17], 0
      %s33 = sshll.u32 %s2, 4
      %s34 = int_to_ptr.hbm [resolvable:$true] %s33
      %s35 = sshll.u32 [#allocation16], 4
      %s36 = int_to_ptr.vmem [resolvable:$true] %s35
      %38 = dma.hbm_to_vmem [thread:$0]  %s34, 128, %s36, [#allocation17]
    $region13: #{tpu_custom_call.1} parent=1 // pred_fallthru
      _
    // Predicated region
    $region14: #{tpu_custom_call.1} parent=1 // pred_check
      _
    $region15: #{tpu_custom_call.1} parent=1 // pred_check_branch
      %40 = sbr.rel (0) target = $region17
    $region16: #{tpu_custom_call.1} parent=1 // pred_region
      %42 = dma.done [#allocation14], 128
    $region17: #{tpu_custom_call.1} parent=1 // pred_fallthru
      _
    // Predicated region
    $region18: #{tpu_custom_call.1} parent=1 // pred_check
      _
    $region19: #{tpu_custom_call.1} parent=1 // pred_check_branch
      %44 = sbr.rel (0) target = $region21
    $region20: #{tpu_custom_call.1} parent=1 // pred_region
      %46 = dma.done [#allocation17], 128
    $region21: #{tpu_custom_call.1} parent=1 // pred_fallthru
      _
    %s48 = sld [smem:[#allocation12]]
    %p49 = scmp.eq.s32.totalorder 0, 0
    %p50 = scmp.eq.s32.totalorder 0, 0
    %p51 = pnand %p49, %p50
    %p52 = pneg %p51
    // Predicated region
    $region22: #{tpu_custom_call.1} parent=1 // pred_check
      _
    $region23: #{tpu_custom_call.1} parent=1 // pred_check_branch
      %54 = sbr.rel (%p51) target = $region25
    $region24: #{tpu_custom_call.1} parent=1 // pred_region
      %vm55 = vcmask 0
      %56 = vst.msk [vmem:[#allocation8] sm:$0x1] %vm55, 0.0
      %57 = vst.msk [vmem:[#allocation9] sm:$0x1] %vm55, 0.0
      %58 = vst.msk [vmem:[#allocation10] sm:$0x1] %vm55, 0.0
      %59 = vst.msk [vmem:[#allocation11] sm:$0x1] %vm55, 0.0
    $region25: #{tpu_custom_call.1} parent=1 // pred_fallthru
      _
    // Predicated region
    $region26: #{tpu_custom_call.1} parent=1 // pred_check
      %p60 = pneg %p50
    $region27: #{tpu_custom_call.1} parent=1 // pred_check_branch
      %62 = sbr.rel (%p60) target = $region29
    $region28: #{tpu_custom_call.1} parent=1 // pred_region
      %v63 = vld [vmem:[#allocation16] sm:$0xff]
      %v64 = vmul.f32 %v63, %v63
      %vm65 = vcmask 261120
      %v66 = vsel %vm65, %v64, 0.0
      %67 = vadd.xlane.f32.xlu0 %v66
      %v68 = vpop.xlane.xlu0 %67
      %v69 = vmax.f32 %v68, 1e-24
      %v70 = vrsqrt.pop %v69
      %v71 = vmul.f32 %v70, %v69
      %v72 = vmul.f32 %v71, %v70
      %v73 = vmul.f32 0.5, %v72
      %v74 = vsub.f32 1.5, %v73
      %v75 = vmul.f32 %v70, %v74
      %vm76 = vweird.f32 %v69
      %vm77 = vweird.f32 %v70
      %vm78 = vmor %vm76, %vm77
      %v79 = vsel %vm78, %v70, %v75
      %v80 = vmul.f32 %v63, %v79
      %v81 = vpack.c.bf16 %v80, %v80
      %vm82 = vcmask 257024
      %83 = vst.msk [vmem:[#allocation2] sm:$0xf] %vm82, %v81
      %vm84 = vcmask 57344
      %85 = vst.msk [vmem:[#allocation6] sm:$0x1] %vm84, -inf
      %86 = vst.msk [vmem:[#allocation7] sm:$0x1] %vm84, 0.0
    $region29: #{tpu_custom_call.1} parent=1 // pred_fallthru
      _
    %s87 = smul.u32 0, 8
    // Predicated region
    $region30: #{tpu_custom_call.1} parent=1 // pred_check
      %p88 = pneg %p49
    $region31: #{tpu_custom_call.1} parent=1 // pred_check_branch
      %90 = sbr.rel (%p88) target = $region33
    $region32: #{tpu_custom_call.1} parent=1 // pred_region
      %s91 = scalar_lea.vmem [#allocation3], %s87
      %vm92 = vcmask 7168
      %93 = vst.msk [vmem:[%s91] sm:$0xff] %vm92, -inf
      %s94 = scalar_lea.vmem [#allocation4], %s87
      %95 = vst.msk [vmem:[%s94] sm:$0xff] %vm92, 0.0
      %s96 = scalar_lea.vmem [#allocation5], %s87
      %97 = vst.msk [vmem:[%s96] sm:$0xff] %vm92, 0.0
    $region33: #{tpu_custom_call.1} parent=1 // pred_fallthru
      _
    %v98 = vld [vmem:[#allocation13] sm:$0xff]
    %v99 = vmul.f32 %v98, %v98
    %vm100 = vcmask 261120
    %v101 = vsel %vm100, %v99, 0.0
    %102 = vadd.xlane.f32.xlu0 %v101
    %v103 = vpop.xlane.xlu0 %102
    %v104 = vmax.f32 %v103, 1e-24
    %v105 = vrsqrt.pop %v104
    %v106 = vmul.f32 %v105, %v104
    %v107 = vmul.f32 %v106, %v105
    %v108 = vmul.f32 0.5, %v107
    %v109 = vsub.f32 1.5, %v108
    %v110 = vmul.f32 %v105, %v109
    %vm111 = vweird.f32 %v104
    %vm112 = vweird.f32 %v105
    %vm113 = vmor %vm111, %vm112
    %v114 = vsel %vm113, %v105, %v110
    %v115 = vstv %s48
    %v116 = vmul.f32 %v115, %v114
    %v117 = vmul.f32 %v98, %v116
    %v118 = vpack.c.bf16 %v117, %v117
    %v119 = vld [vmem:[#allocation2] sm:$0xf]
    %v121 = vsel %vm100, %v118, 0
    %v124 = vsel %vm100, %v119, 0
    %126 = vmatpush.bf16.xpose.msra.mxu0 0
    %127 = vmatpush.bf16.xpose.msra.mxu0 0
    %128 = vmatpush.bf16.xpose.msra.mxu0 0
    %129 = vmatpush.bf16.xpose.msra.mxu0 0
    %130 = vmatpush.bf16.xpose.msra.mxu0 0
    %131 = vmatpush.bf16.xpose.msra.mxu0 0
    %132 = vmatpush.bf16.xpose.msra.mxu0 0
    %133 = vmatpush.bf16.xpose.msra.mxu0 %v124
    %134 = vmatmul.bf16.gmra.mxu0 %v121
    %v135 = vpop.f32.mrf.mxu0
    %v136 = vadd.f32 0.0, %v135
    %v137 = vpop.f32.mrf.mxu0
    %138 = vdwg.mxu0
    %v139 = vlaneseq
    %v140 = vand.u32 %v139, 127
    %s141 = smul.u32 0, 8
    %s142 = ssub.s32 %s87, %s141
    %v143 = vlaneseq
    %v144 = vshrl.u32 %v143, 7
    %v145 = vstv %s142
    %v146 = vadd.s32 %v145, %v144
    %vm147 = vcmp.eq.s32.totalorder %v140, %v146
    %v148 = vsel %vm147, %v136, 0.0
    %vm149 = vcmask 64512
    %v150 = vsel %vm149, %v148, 0.0
    %151 = vadd.xlane.f32.xlu0 %v150
    %v152 = vpop.xlane.xlu0 %151
    %s153 = scalar_lea.vmem [#allocation3], %s87
    %v154 = vld [vmem:[%s153] sm:$0xff]
    %s155 = scalar_lea.vmem [#allocation4], %s87
    %v156 = vld [vmem:[%s155] sm:$0xff]
    %v157 = vsel %vm149, %v136, -inf
    %158 = vmax.xlane.f32.xlu0 %v157
    %v159 = vpop.xlane.xlu0 %158
    %v160 = vmax.f32 %v154, %v159
    %v161 = vsub.f32 %v154, %v160
    %v162 = vmul.f32 %v161, 1.442695
    %v163 = vpow.pop %v162
    %v164 = vmul.f32 %v156, %v163
    %166 = vset.pattern.permute.xlu0 0
    %167 = vperm.xlu0 %166, %v160
    %v168 = vpop.permute.xlu0 %167
    %v170 = vsub.f32 %v136, %v168
    %v171 = vmul.f32 %v170, 1.442695
    %v172 = vpow.pop %v171
    %v173 = vsel %vm149, %v172, 0.0
    %174 = vadd.xlane.f32.xlu0 %v173
    %v175 = vpop.xlane.xlu0 %174
    %v176 = vadd.f32 %v164, %v175
    %s177 = scalar_lea.vmem [#allocation5], %s87
    %v178 = vld [vmem:[%s177] sm:$0xff]
    %v179 = vadd.f32 %v178, %v152
    %vm180 = vcmask 7168
    %181 = vst.msk [vmem:[%s153] sm:$0xff] %vm180, %v160
    %182 = vst.msk [vmem:[%s155] sm:$0xff] %vm180, %v176
    %183 = vst.msk [vmem:[%s177] sm:$0xff] %vm180, %v179
    %v184 = vrot.slane %v157, 4
    %v185 = vmax.f32 %v157, %v184
    %v186 = vrot.slane %v185, 2
    %v187 = vmax.f32 %v185, %v186
    %v188 = vrot.slane %v187, 1
    %v189 = vmax.f32 %v187, %v188
    %v190 = vld [vmem:[#allocation6] sm:$0x1]
    %v191 = vmax.f32 %v190, %v189
    %v192 = vld [vmem:[#allocation7] sm:$0x1]
    %v193 = vsub.f32 %v190, %v191
    %v194 = vmul.f32 %v193, 1.442695
    %v195 = vpow.pop %v194
    %v196 = vmul.f32 %v192, %v195
    %v198 = vperm.slane %v191, 0
    %v200 = vsub.f32 %v136, %v198
    %v201 = vmul.f32 %v200, 1.442695
    %v202 = vpow.pop %v201
    %v203 = vsel %vm149, %v202, 0.0
    %v204 = vrot.slane %v203, 4
    %v205 = vadd.f32 %v203, %v204
    %v206 = vrot.slane %v205, 2
    %v207 = vadd.f32 %v205, %v206
    %v208 = vrot.slane %v207, 1
    %v209 = vadd.f32 %v207, %v208
    %v210 = vadd.f32 %v196, %v209
    %vm211 = vcmask 57344
    %212 = vst.msk [vmem:[#allocation7] sm:$0x1] %vm211, %v210
    %213 = vst.msk [vmem:[#allocation6] sm:$0x1] %vm211, %v191
    // Predicated region
    $region34: #{tpu_custom_call.1} parent=1 // pred_check
      %p214 = pneg %p49
    $region35: #{tpu_custom_call.1} parent=1 // pred_check_branch
      %216 = sbr.rel (%p214) target = $region37
    $region36: #{tpu_custom_call.1} parent=1 // pred_region
      %v217 = vld [vmem:[#allocation8] sm:$0x1]
      %v218 = vlog2.pop %v176
      %v219 = vmul.f32 %v218, 0.6931472
      %v220 = vadd.f32 %v160, %v219
      %v221 = vsel %vm180, %v220, 0.0
      %v222 = vrot.slane %v221, 4
      %v223 = vadd.f32 %v221, %v222
      %v224 = vrot.slane %v223, 2
      %v225 = vadd.f32 %v223, %v224
      %v226 = vrot.slane %v225, 1
      %v227 = vadd.f32 %v225, %v226
      %v228 = vadd.f32 %v217, %v227
      %vm229 = vcmask 0
      %230 = vst.msk [vmem:[#allocation8] sm:$0x1] %vm229, %v228
      %v231 = vld [vmem:[#allocation10] sm:$0x1]
      %v232 = vsel %vm180, %v179, 0.0
      %v233 = vrot.slane %v232, 4
      %v234 = vadd.f32 %v232, %v233
      %v235 = vrot.slane %v234, 2
      %v236 = vadd.f32 %v234, %v235
      %v237 = vrot.slane %v236, 1
      %v238 = vadd.f32 %v236, %v237
      %v239 = vadd.f32 %v231, %v238
      %240 = vst.msk [vmem:[#allocation10] sm:$0x1] %vm229, %v239
      %v241 = vld [vmem:[#allocation11] sm:$0x1]
      %vm242 = vcmp.eq.f32.partialorder %v179, %v160
      %v243 = vsel %vm242, 1, 0
      %v244 = vcvt.s32.f32 %v243
      %v245 = vsel %vm180, %v244, 0.0
      %v246 = vrot.slane %v245, 4
      %v247 = vadd.f32 %v245, %v246
      %v248 = vrot.slane %v247, 2
      %v249 = vadd.f32 %v247, %v248
      %v250 = vrot.slane %v249, 1
      %v251 = vadd.f32 %v249, %v250
      %v252 = vadd.f32 %v241, %v251
      %253 = vst.msk [vmem:[#allocation11] sm:$0x1] %vm229, %v252
    $region37: #{tpu_custom_call.1} parent=1 // pred_fallthru
      _
    // Predicated region
    $region38: #{tpu_custom_call.1} parent=1 // pred_check
      %p254 = pneg %p50
    $region39: #{tpu_custom_call.1} parent=1 // pred_check_branch
      %256 = sbr.rel (%p254) target = $region41
    $region40: #{tpu_custom_call.1} parent=1 // pred_region
      %v257 = vld [vmem:[#allocation9] sm:$0x1]
      %v258 = vld [vmem:[#allocation6] sm:$0x1]
      %v259 = vld [vmem:[#allocation7] sm:$0x1]
      %v260 = vlog2.pop %v259
      %v261 = vmul.f32 %v260, 0.6931472
      %v262 = vadd.f32 %v258, %v261
      %v263 = vsel %vm211, %v262, 0.0
      %264 = vadd.xlane.f32.xlu0 %v263
      %v265 = vpop.xlane.xlu0 %264
      %v266 = vadd.f32 %v257, %v265
      %vm267 = vcmask 0
      %268 = vst.msk [vmem:[#allocation9] sm:$0x1] %vm267, %v266
    $region41: #{tpu_custom_call.1} parent=1 // pred_fallthru
      _
    // Predicated region
    $region42: #{tpu_custom_call.1} parent=1 // pred_check
      _
    $region43: #{tpu_custom_call.1} parent=1 // pred_check_branch
      %270 = sbr.rel (%p51) target = $region45
    $region44: #{tpu_custom_call.1} parent=1 // pred_region
      %v271 = vld [vmem:[#allocation8] sm:$0x1]
      %v272 = vld [vmem:[#allocation10] sm:$0x1]
      %v273 = vsub.f32 %v271, %v272
      %v274 = vld [vmem:[#allocation9] sm:$0x1]
      %v275 = vsub.f32 %v274, %v272
      %v276 = vadd.f32 %v273, %v275
      %v277 = vmul.f32 %v276, 0.5
      %v278 = vrcp.pop 8.0
      %v279 = vmul.f32 8.0, %v278
      %v280 = vsub.f32 1.0, %v279
      %v281 = vmul.f32 %v278, %v280
      %v282 = vadd.f32 %v278, %v281
      %vm283 = vweird.f32 %v278
      %v284 = vsel %vm283, %v278, %v282
      %v285 = vmul.f32 %v277, %v284
      %vm286 = vcmask 0
      %287 = vst.msk [vmem:[#allocation18] sm:$0x1] %vm286, %v285
      %v288 = vld [vmem:[#allocation11] sm:$0x1]
      %v289 = vmul.f32 %v288, 100.0
      %v290 = vmul.f32 %v289, %v284
      %291 = vst.msk [vmem:[#allocation19] sm:$0x1] %vm286, %v290
    $region45: #{tpu_custom_call.1} parent=1 // pred_fallthru
      _
    // Predicated region
    $region46: #{tpu_custom_call.1} parent=1 // pred_check
      _
    $region47: #{tpu_custom_call.1} parent=1 // pred_check_branch
      %293 = sbr.rel (0) target = $region49
    $region48: #{tpu_custom_call.1} parent=1 // pred_region
      %295 = vsyncadd [#allocation15], 0
      %s297 = sshll.u32 [#allocation18], 4
      %s298 = int_to_ptr.vmem [resolvable:$true] %s297
      %s299 = sshll.u32 %s3, 4
      %s300 = int_to_ptr.hbm [resolvable:$true] %s299
      %302 = dma.vmem_to_hbm [thread:$0]  %s298, 16, %s300, [#allocation15]
    $region49: #{tpu_custom_call.1} parent=1 // pred_fallthru
      _
    // Predicated region
    $region50: #{tpu_custom_call.1} parent=1 // pred_check
      _
    $region51: #{tpu_custom_call.1} parent=1 // pred_check_branch
      %304 = sbr.rel (0) target = $region53
    $region52: #{tpu_custom_call.1} parent=1 // pred_region
      %306 = vsyncadd [#allocation20], 0
      %s308 = sshll.u32 [#allocation19], 4
      %s309 = int_to_ptr.vmem [resolvable:$true] %s308
      %s310 = sshll.u32 %s4, 4
      %s311 = int_to_ptr.hbm [resolvable:$true] %s310
      %313 = dma.vmem_to_hbm [thread:$0]  %s309, 16, %s311, [#allocation20]
    $region53: #{tpu_custom_call.1} parent=1 // pred_fallthru
      _
    // Predicated region
    $region54: #{tpu_custom_call.1} parent=1 // pred_check
      _
    $region55: #{tpu_custom_call.1} parent=1 // pred_check_branch
      %315 = sbr.rel (0) target = $region57
    $region56: #{tpu_custom_call.1} parent=1 // pred_region
      %317 = dma.done [#allocation15], 16
    $region57: #{tpu_custom_call.1} parent=1 // pred_fallthru
      _
    // Predicated region
    $region58: #{tpu_custom_call.1} parent=1 // pred_check
      _
    $region59: #{tpu_custom_call.1} parent=1 // pred_check_branch
      %319 = sbr.rel (0) target = $region61
    $region60: #{tpu_custom_call.1} parent=1 // pred_region
      %321 = dma.done [#allocation20], 16
    $region61: #{tpu_custom_call.1} parent=1 // pred_fallthru
      _
    %322 = vsyncpa [#allocation14], 1
    %323 = vsyncpa [#allocation17], 1
    %324 = vsyncpa [#allocation15], 1
    %325 = vsyncpa [#allocation20], 1

</llo_original>
